<compile_context>
chip_gen: v5e
topology: v5e:2x2
jax: 0.10.0
libtpu: 0.0.40
codegen_flags: <defaults>
</compile_context>

<pallas_src>
import functools

import jax
import jax.numpy as jnp
import numpy as np
from jax.experimental import pallas as pl
from jax.experimental.pallas import tpu as pltpu


def _round_up(x, m):
    return ((x + m - 1) // m) * m


def _pad2d(a, shape):
    pads = [(0, t - s) for s, t in zip(a.shape, shape)]
    if all(p == (0, 0) for p in pads):
        return a
    return jnp.pad(a, pads)


def _mlp_kernel(x_ref, w1_ref, b1_ref, w2_ref, b2_ref, out_ref, emb_ref):
    # x arrives as f32 (no wrapper pad/cast pass); cast to bf16 just before the
    # MXU matmul.  Both matmuls accumulate in f32; bias/ReLU are f32 on the VPU.
    x_bf = x_ref[...].astype(jnp.bfloat16)
    h = jnp.dot(x_bf, w1_ref[...], preferred_element_type=jnp.float32)
    emb_f32 = jnp.maximum(h + b1_ref[...], 0.0)
    emb_bf = emb_f32.astype(jnp.bfloat16)
    if emb_ref.dtype == jnp.bfloat16:
        emb_ref[...] = emb_bf                    # halved writeback, no 2nd cast
    else:
        emb_ref[...] = emb_f32.astype(emb_ref.dtype)
    o = jnp.dot(emb_bf, w2_ref[...], preferred_element_type=jnp.float32)
    out_ref[...] = (o + b2_ref[...]).astype(out_ref.dtype)


@functools.partial(jax.jit,
                   static_argnames=("emb_size", "n_classes", "emb_dtype"))
def mlp_mod_forward(x, w1, b1, w2, b2, *, emb_size, n_classes,
                    emb_dtype=jnp.bfloat16):
    """Pallas forward of mlpMod.  Returns (out[f32], emb[emb_dtype])."""
    B = x.shape[0]
    D = int(np.prod(x.shape[1:]))
    x2d = x.reshape(B, D)                         # x.view(-1, dim)

    # Lane-dense padding (multiples of 128 on the lane axis).
    Dp = _round_up(D, 128)
    Ep = _round_up(emb_size, 128)
    Cp = _round_up(n_classes, 128)

    # Batch tiling:
    #  * B <= 128: one full block (no batch padding, no post-slice copy);
    #    splitting a tiny, latency-bound call across v7x cores doesn't pay.
    #  * B  > 128: >=2 grid steps (v7x megacore keeps both TCs busy), tiles up
    #    to 512 rows to amortize ~0.35 us/step overhead.  Per-step VMEM with
    #    f32 x blocks at 512 rows is ~5.6 MB (double-buffered x/emb/out plus
    #    resident weights) -- well inside v5e's 16 MiB scoped default.
    if B <= 128:
        tile_b, nb = B, 1
    else:
        nb = max(2, pl.cdiv(B, 512))
        tile_b = _round_up(pl.cdiv(B, nb), 16)    # 16: bf16 sublane packing
        nb = pl.cdiv(B, tile_b)
    Bp = tile_b * nb

    # x stays f32 (cast happens in-kernel); padding is a no-op when aligned.
    xp = _pad2d(x2d, (Bp, Dp))
    w1p = _pad2d(w1, (Dp, Ep)).astype(jnp.bfloat16)
    b1p = _pad2d(b1.reshape(1, emb_size), (1, Ep)).astype(jnp.float32)
    w2p = _pad2d(w2, (Ep, Cp)).astype(jnp.bfloat16)
    b2p = _pad2d(b2.reshape(1, n_classes), (1, Cp)).astype(jnp.float32)

    emb_itemsize = jnp.dtype(emb_dtype).itemsize
    cost = pl.CostEstimate(
        # True work (unpadded dims), true HBM bytes (f32 x, bf16 weights/emb).
        flops=2 * B * D * emb_size + 2 * B * emb_size * n_classes,
        bytes_accessed=(xp.size * xp.dtype.itemsize
                        + w1p.size * 2 + w2p.size * 2
                        + b1p.size * 4 + b2p.size * 4
                        + Bp * Cp * 4 + Bp * Ep * emb_itemsize),
        transcendentals=0,
    )

    out_p, emb_p = pl.pallas_call(
        _mlp_kernel,
        out_shape=(
            jax.ShapeDtypeStruct((Bp, Cp), jnp.float32),
            jax.ShapeDtypeStruct((Bp, Ep), emb_dtype),
        ),
        grid_spec=pltpu.PrefetchScalarGridSpec(
            num_scalar_prefetch=0,
            grid=(nb,),
            in_specs=[
                # Activations: blocked over the batch grid axis (auto
                # double-buffered by the BlockSpec pipeline).
                pl.BlockSpec((tile_b, Dp), lambda i: (i, 0)),
                # Weights / biases: constant block index -> VMEM-resident
                # across all grid steps (no re-DMA per batch tile).
                pl.BlockSpec((Dp, Ep), lambda i: (0, 0)),
                pl.BlockSpec((1, Ep), lambda i: (0, 0)),
                pl.BlockSpec((Ep, Cp), lambda i: (0, 0)),
                pl.BlockSpec((1, Cp), lambda i: (0, 0)),
            ],
            out_specs=[
                pl.BlockSpec((tile_b, Cp), lambda i: (i, 0)),
                pl.BlockSpec((tile_b, Ep), lambda i: (i, 0)),
            ],
        ),
        compiler_params=pltpu.CompilerParams(
            # Batch axis shards across TensorCores on v7x; harmless no-op on
            # single-TC v5e/v6e.
            dimension_semantics=("parallel",),
        ),
        cost_estimate=cost,
    )(xp, w1p, b1p, w2p, b2p)

    # Strip padding only when actually needed (avoid no-op slice copies).
    out = out_p if (Bp == B and Cp == n_classes) else out_p[:B, :n_classes]
    emb = emb_p if (Bp == B and Ep == emb_size) else emb_p[:B, :emb_size]
    return out, emb


def init_params(key, dim, emb_size, n_classes):
    """Deterministic init mimicking nn.Linear defaults (uniform +/- 1/sqrt(fan_in))."""
    k1, k2, k3, k4 = jax.random.split(key, 4)
    bound1 = 1.0 / np.sqrt(dim)
    bound2 = 1.0 / np.sqrt(emb_size)
    # Stored already transposed: (in_features, out_features).
    w1 = jax.random.uniform(k1, (dim, emb_size), jnp.float32, -bound1, bound1)
    b1 = jax.random.uniform(k2, (emb_size,), jnp.float32, -bound1, bound1)
    w2 = jax.random.uniform(k3, (emb_size, n_classes), jnp.float32, -bound2, bound2)
    b2 = jax.random.uniform(k4, (n_classes,), jnp.float32, -bound2, bound2)
    return w1, b1, w2, b2


if __name__ == "__main__":
    key = jax.random.PRNGKey(0)
    kx, kp = jax.random.split(key)

    # Module config: dim = (4, 16, 16) -> flattened 1024, embSize=256, nClasses=10
    B, C, H, W = 2, 4, 16, 16
    emb_size, n_classes = 256, 10
    D = C * H * W

    x = jax.random.normal(kx, (B, C, H, W), jnp.float32)
    w1, b1, w2, b2 = init_params(kp, D, emb_size, n_classes)

    out, emb = mlp_mod_forward(x, w1, b1, w2, b2,
                               emb_size=emb_size, n_classes=n_classes)
    jax.block_until_ready((out, emb))
    assert out.shape == (B, n_classes) and emb.shape == (B, emb_size)

    # Cross-check against a plain-JAX f32 reference of the PyTorch forward.
    # Tolerance loosened because the kernel runs the matmuls in bf16 (f32
    # accumulation) and emits emb in bf16.
    x2d = x.reshape(B, D)
    emb_ref = jnp.maximum(x2d @ w1 + b1, 0.0)
    out_ref = emb_ref @ w2 + b2
    np.testing.assert_allclose(np.asarray(emb.astype(jnp.float32)),
                               np.asarray(emb_ref), rtol=2e-2, atol=2e-2)
    np.testing.assert_allclose(np.asarray(out), np.asarray(out_ref),
                               rtol=2e-2, atol=2e-2)

    print("KERNEL_OK")
</pallas_src>

<mosaic_0001>
module attributes {stable_mosaic.version = 11 : i64} {
  func.func @_mlp_kernel(%arg0: i32, %arg1: memref<2x1024xf32, #tpu.memory_space<vmem>>, %arg2: memref<1024x256xbf16, #tpu.memory_space<vmem>>, %arg3: memref<1x256xf32, #tpu.memory_space<vmem>>, %arg4: memref<256x128xbf16, #tpu.memory_space<vmem>>, %arg5: memref<1x128xf32, #tpu.memory_space<vmem>>, %arg6: memref<2x128xf32, #tpu.memory_space<vmem>>, %arg7: memref<2x256xbf16, #tpu.memory_space<vmem>>) attributes {dimension_semantics = [#tpu.dimension_semantics<parallel>], iteration_bounds = array<i64: 1>, scalar_prefetch = 0 : i64, scratch_operands = 0 : i64, tpu.core_type = #tpu.core_type<tc>, window_params = [{transform_indices = @transform_0, window_bounds = array<i64: 2, 1024>}, {pipeline_mode = #tpu.pipeline_mode<synchronous>, transform_indices = @transform_1, window_bounds = array<i64: 1024, 256>}, {pipeline_mode = #tpu.pipeline_mode<synchronous>, transform_indices = @transform_2, window_bounds = array<i64: 1, 256>}, {pipeline_mode = #tpu.pipeline_mode<synchronous>, transform_indices = @transform_3, window_bounds = array<i64: 256, 128>}, {pipeline_mode = #tpu.pipeline_mode<synchronous>, transform_indices = @transform_4, window_bounds = array<i64: 1, 128>}, {transform_indices = @transform_5, window_bounds = array<i64: 2, 128>}, {transform_indices = @transform_6, window_bounds = array<i64: 2, 256>}]} {
    %c0 = arith.constant 0 : index
    %c0_0 = arith.constant 0 : index
    %0 = vector.load %arg1[%c0, %c0_0] : memref<2x1024xf32, #tpu.memory_space<vmem>>, vector<2x1024xf32>
    %1 = arith.truncf %0 : vector<2x1024xf32> to vector<2x1024xbf16>
    %c0_1 = arith.constant 0 : index
    %c0_2 = arith.constant 0 : index
    %2 = vector.load %arg2[%c0_1, %c0_2] : memref<1024x256xbf16, #tpu.memory_space<vmem>>, vector<1024x256xbf16>
    %cst = arith.constant dense<0.000000e+00> : vector<2x256xf32>
    %3 = tpu.matmul %1, %2, %cst {dimension_numbers = #tpu.dot_dimension_numbers<[1], [0], [0], [1], [0, 0, 1, 1], [], []>} : vector<2x1024xbf16>, vector<1024x256xbf16>, vector<2x256xf32> -> vector<2x256xf32>
    %c0_3 = arith.constant 0 : index
    %c0_4 = arith.constant 0 : index
    %4 = vector.load %arg3[%c0_3, %c0_4] : memref<1x256xf32, #tpu.memory_space<vmem>>, vector<1x256xf32>
    %5 = vector.broadcast %4 : vector<1x256xf32> to vector<2x256xf32>
    %6 = arith.addf %3, %5 : vector<2x256xf32>
    %cst_5 = arith.constant 0.000000e+00 : f32
    %7 = vector.broadcast %cst_5 : f32 to vector<2x256xf32>
    %8 = arith.maximumf %6, %7 : vector<2x256xf32>
    %9 = arith.truncf %8 : vector<2x256xf32> to vector<2x256xbf16>
    %c0_6 = arith.constant 0 : index
    %c0_7 = arith.constant 0 : index
    %10 = vector.load %arg7[%c0_6, %c0_7] : memref<2x256xbf16, #tpu.memory_space<vmem>>, vector<2x256xbf16>
    tpu.vector_store %arg7[%c0_6, %c0_7], %9 {strides = array<i32>} : memref<2x256xbf16, #tpu.memory_space<vmem>>, vector<2x256xbf16>,
    %c0_8 = arith.constant 0 : index
    %c0_9 = arith.constant 0 : index
    %11 = vector.load %arg4[%c0_8, %c0_9] : memref<256x128xbf16, #tpu.memory_space<vmem>>, vector<256x128xbf16>
    %cst_10 = arith.constant dense<0.000000e+00> : vector<2x128xf32>
    %12 = tpu.matmul %9, %11, %cst_10 {dimension_numbers = #tpu.dot_dimension_numbers<[1], [0], [0], [1], [0, 0, 1, 1], [], []>} : vector<2x256xbf16>, vector<256x128xbf16>, vector<2x128xf32> -> vector<2x128xf32>
    %c0_11 = arith.constant 0 : index
    %c0_12 = arith.constant 0 : index
    %13 = vector.load %arg5[%c0_11, %c0_12] : memref<1x128xf32, #tpu.memory_space<vmem>>, vector<1x128xf32>
    %14 = vector.broadcast %13 : vector<1x128xf32> to vector<2x128xf32>
    %15 = arith.addf %12, %14 : vector<2x128xf32>
    %c0_13 = arith.constant 0 : index
    %c0_14 = arith.constant 0 : index
    %16 = vector.load %arg6[%c0_13, %c0_14] : memref<2x128xf32, #tpu.memory_space<vmem>>, vector<2x128xf32>
    tpu.vector_store %arg6[%c0_13, %c0_14], %15 {strides = array<i32>} : memref<2x128xf32, #tpu.memory_space<vmem>>, vector<2x128xf32>,
    return
  }
  func.func @transform_0(%arg0: i32) -> (i32, i32) {
    %c0_i32 = arith.constant 0 : i32
    %c0_i32_0 = arith.constant 0 : i32
    return %arg0, %c0_i32 : i32, i32
  }
  func.func @transform_1(%arg0: i32) -> (i32, i32) {
    %c0_i32 = arith.constant 0 : i32
    %c0_i32_0 = arith.constant 0 : i32
    %c0_i32_1 = arith.constant 0 : i32
    return %c0_i32, %c0_i32_0 : i32, i32
  }
  func.func @transform_2(%arg0: i32) -> (i32, i32) {
    %c0_i32 = arith.constant 0 : i32
    %c0_i32_0 = arith.constant 0 : i32
    %c0_i32_1 = arith.constant 0 : i32
    return %c0_i32, %c0_i32_0 : i32, i32
  }
  func.func @transform_3(%arg0: i32) -> (i32, i32) {
    %c0_i32 = arith.constant 0 : i32
    %c0_i32_0 = arith.constant 0 : i32
    %c0_i32_1 = arith.constant 0 : i32
    return %c0_i32, %c0_i32_0 : i32, i32
  }
  func.func @transform_4(%arg0: i32) -> (i32, i32) {
    %c0_i32 = arith.constant 0 : i32
    %c0_i32_0 = arith.constant 0 : i32
    %c0_i32_1 = arith.constant 0 : i32
    return %c0_i32, %c0_i32_0 : i32, i32
  }
  func.func @transform_5(%arg0: i32) -> (i32, i32) {
    %c0_i32 = arith.constant 0 : i32
    %c0_i32_0 = arith.constant 0 : i32
    return %arg0, %c0_i32 : i32, i32
  }
  func.func @transform_6(%arg0: i32) -> (i32, i32) {
    %c0_i32 = arith.constant 0 : i32
    %c0_i32_0 = arith.constant 0 : i32
    return %arg0, %c0_i32 : i32, i32
  }
}

</mosaic_0001>

<llo_original>
// kernel: mlp_mod_forward.1
$region0: #{mlp_mod_forward.1}
  #allocation0 [shape = 'u32[]', space=smem, size = 0x4, offset = 0x4, fixed_abs, tag = 'smem constant byte address 0x4 - core index']
  #allocation1 [shape = 'u32[72,128]{1,0:T(1,128)}', space=vmem, size = 0x9000, scoped, tag = 'internal scratch']
  %s0 = inlined_call_operand.vmem [shape: f32[2,1024], index: 0, kind: input, shape index: {}]
  %s1 = inlined_call_operand.vmem [shape: bf16[1024,256], index: 1, kind: input, shape index: {}]
  %s2 = inlined_call_operand.vmem [shape: f32[1,256], index: 2, kind: input, shape index: {}]
  %s3 = inlined_call_operand.vmem [shape: bf16[256,128], index: 3, kind: input, shape index: {}]
  %s4 = inlined_call_operand.vmem [shape: f32[1,128], index: 4, kind: input, shape index: {}]
  %s5 = inlined_call_operand.hbm [shape: f32[2,128], index: 5, kind: output, shape index: {0}]
  %s6 = inlined_call_operand.hbm [shape: bf16[2,256], index: 6, kind: output, shape index: {1}]
  %7 = xla_tuple %s5, %s6
  %s8 = sld [smem:[#allocation0]]
  $region38: #{mlp_mod_forward.1} parent=0
    _
  %s10 = ssub.s32 1, %s8
  %s11 = scalar_select 0, %s10, %s8
  $region1: #{mlp_mod_forward.1} parent=0
    #allocation2 [shape = 'u8[1024]{0}', space=vmem, size = 0x400, scoped, tag = 'output window, operand 0, single buffered']
    #allocation3 [shape = 's32[1]{0}', space=sflag, size = 0x4, scoped, tag = 'scoped memory for mlp_mod_forward.1']
    #allocation4 [shape = 'u8[1024]{0}', space=vmem, size = 0x400, scoped, tag = 'output window, operand 1, single buffered']
    #allocation5 [shape = 's32[1]{0}', space=sflag, size = 0x4, scoped, tag = 'scoped memory for mlp_mod_forward.1']
    %12 = vsyncpa [#allocation3], 0
    %13 = vsyncpa [#allocation5], 0
    // Predicated region
    $region2: #{mlp_mod_forward.1} parent=1 // pred_check
      _
    $region3: #{mlp_mod_forward.1} parent=1 // pred_check_branch
      %15 = sbr.rel (0) target = $region5
    $region4: #{mlp_mod_forward.1} parent=1 // pred_region
      _
    $region5: #{mlp_mod_forward.1} parent=1 // pred_fallthru
      _
    // Predicated region
    $region6: #{mlp_mod_forward.1} parent=1 // pred_check
      _
    $region7: #{mlp_mod_forward.1} parent=1 // pred_check_branch
      %17 = sbr.rel (0) target = $region9
    $region8: #{mlp_mod_forward.1} parent=1 // pred_region
      _
    $region9: #{mlp_mod_forward.1} parent=1 // pred_fallthru
      _
    // Predicated region
    $region10: #{mlp_mod_forward.1} parent=1 // pred_check
      _
    $region11: #{mlp_mod_forward.1} parent=1 // pred_check_branch
      %19 = sbr.rel (0) target = $region13
    $region12: #{mlp_mod_forward.1} parent=1 // pred_region
      _
    $region13: #{mlp_mod_forward.1} parent=1 // pred_fallthru
      _
    // Predicated region
    $region14: #{mlp_mod_forward.1} parent=1 // pred_check
      _
    $region15: #{mlp_mod_forward.1} parent=1 // pred_check_branch
      %21 = sbr.rel (0) target = $region17
    $region16: #{mlp_mod_forward.1} parent=1 // pred_region
      _
    $region17: #{mlp_mod_forward.1} parent=1 // pred_fallthru
      _
    // Predicated region
    $region18: #{mlp_mod_forward.1} parent=1 // pred_check
      _
    $region19: #{mlp_mod_forward.1} parent=1 // pred_check_branch
      %23 = sbr.rel (0) target = $region21
    $region20: #{mlp_mod_forward.1} parent=1 // pred_region
      _
    $region21: #{mlp_mod_forward.1} parent=1 // pred_fallthru
      _
    %v24 = vld [vmem:[%s0] sm:$0xff]
    %v25 = vld [vmem:[%s0 + $0x8] sm:$0xff]
    %28 = vst [vmem:[#allocation1] ss:$4 sm:$0xff] %v24
    %s29 = scalar_lea.vmem [#allocation1], 32
    %30 = vst [vmem:[%s29] ss:$4 sm:$0xff] %v25
    %v31 = vld.sshfl [vmem:[#allocation1] sm:$0xff pattern:$0x73625140]
    %v32 = vld.sshfl [vmem:[#allocation1 + $0x8] sm:$0xff pattern:$0x73625140]
    %v33 = vld.sshfl [vmem:[#allocation1 + $0x10] sm:$0xff pattern:$0x73625140]
    %v34 = vld.sshfl [vmem:[#allocation1 + $0x18] sm:$0xff pattern:$0x73625140]
    %v35 = vld.sshfl [vmem:[#allocation1 + $0x20] sm:$0xff pattern:$0x73625140]
    %v36 = vld.sshfl [vmem:[#allocation1 + $0x28] sm:$0xff pattern:$0x73625140]
    %v37 = vld.sshfl [vmem:[#allocation1 + $0x30] sm:$0xff pattern:$0x73625140]
    %v38 = vld.sshfl [vmem:[#allocation1 + $0x38] sm:$0xff pattern:$0x73625140]
    %v47 = vpack.c.bf16 %v31, %v31
    %v48 = vpack.c.bf16 %v32, %v32
    %v49 = vpack.c.bf16 %v33, %v33
    %v50 = vpack.c.bf16 %v34, %v34
    %v51 = vpack.c.bf16 %v35, %v35
    %v52 = vpack.c.bf16 %v36, %v36
    %v53 = vpack.c.bf16 %v37, %v37
    %v54 = vpack.c.bf16 %v38, %v38
    %v55 = vld [vmem:[%s1] sm:$0xff]
    %v56 = vld [vmem:[%s1 + $0x8] sm:$0xff]
    %v57 = vld [vmem:[%s1 + $0x10] sm:$0xff]
    %v58 = vld [vmem:[%s1 + $0x18] sm:$0xff]
    %v59 = vld [vmem:[%s1 + $0x20] sm:$0xff]
    %v60 = vld [vmem:[%s1 + $0x28] sm:$0xff]
    %v61 = vld [vmem:[%s1 + $0x30] sm:$0xff]
    %v62 = vld [vmem:[%s1 + $0x38] sm:$0xff]
    %v63 = vld [vmem:[%s1 + $0x40] sm:$0xff]
    %v64 = vld [vmem:[%s1 + $0x48] sm:$0xff]
    %v65 = vld [vmem:[%s1 + $0x50] sm:$0xff]
    %v66 = vld [vmem:[%s1 + $0x58] sm:$0xff]
    %v67 = vld [vmem:[%s1 + $0x60] sm:$0xff]
    %v68 = vld [vmem:[%s1 + $0x68] sm:$0xff]
    %v69 = vld [vmem:[%s1 + $0x70] sm:$0xff]
    %v70 = vld [vmem:[%s1 + $0x78] sm:$0xff]
    %v71 = vld [vmem:[%s1 + $0x80] sm:$0xff]
    %v72 = vld [vmem:[%s1 + $0x88] sm:$0xff]
    %v73 = vld [vmem:[%s1 + $0x90] sm:$0xff]
    %v74 = vld [vmem:[%s1 + $0x98] sm:$0xff]
    %v75 = vld [vmem:[%s1 + $0xa0] sm:$0xff]
    %v76 = vld [vmem:[%s1 + $0xa8] sm:$0xff]
    %v77 = vld [vmem:[%s1 + $0xb0] sm:$0xff]
    %v78 = vld [vmem:[%s1 + $0xb8] sm:$0xff]
    %v79 = vld [vmem:[%s1 + $0xc0] sm:$0xff]
    %v80 = vld [vmem:[%s1 + $0xc8] sm:$0xff]
    %v81 = vld [vmem:[%s1 + $0xd0] sm:$0xff]
    %v82 = vld [vmem:[%s1 + $0xd8] sm:$0xff]
    %v83 = vld [vmem:[%s1 + $0xe0] sm:$0xff]
    %v84 = vld [vmem:[%s1 + $0xe8] sm:$0xff]
    %v85 = vld [vmem:[%s1 + $0xf0] sm:$0xff]
    %v86 = vld [vmem:[%s1 + $0xf8] sm:$0xff]
    %v87 = vld [vmem:[%s1 + $0x100] sm:$0xff]
    %v88 = vld [vmem:[%s1 + $0x108] sm:$0xff]
    %v89 = vld [vmem:[%s1 + $0x110] sm:$0xff]
    %v90 = vld [vmem:[%s1 + $0x118] sm:$0xff]
    %v91 = vld [vmem:[%s1 + $0x120] sm:$0xff]
    %v92 = vld [vmem:[%s1 + $0x128] sm:$0xff]
    %v93 = vld [vmem:[%s1 + $0x130] sm:$0xff]
    %v94 = vld [vmem:[%s1 + $0x138] sm:$0xff]
    %v95 = vld [vmem:[%s1 + $0x140] sm:$0xff]
    %v96 = vld [vmem:[%s1 + $0x148] sm:$0xff]
    %v97 = vld [vmem:[%s1 + $0x150] sm:$0xff]
    %v98 = vld [vmem:[%s1 + $0x158] sm:$0xff]
    %v99 = vld [vmem:[%s1 + $0x160] sm:$0xff]
    %v100 = vld [vmem:[%s1 + $0x168] sm:$0xff]
    %v101 = vld [vmem:[%s1 + $0x170] sm:$0xff]
    %v102 = vld [vmem:[%s1 + $0x178] sm:$0xff]
    %v103 = vld [vmem:[%s1 + $0x180] sm:$0xff]
    %v104 = vld [vmem:[%s1 + $0x188] sm:$0xff]
    %v105 = vld [vmem:[%s1 + $0x190] sm:$0xff]
    %v106 = vld [vmem:[%s1 + $0x198] sm:$0xff]
    %v107 = vld [vmem:[%s1 + $0x1a0] sm:$0xff]
    %v108 = vld [vmem:[%s1 + $0x1a8] sm:$0xff]
    %v109 = vld [vmem:[%s1 + $0x1b0] sm:$0xff]
    %v110 = vld [vmem:[%s1 + $0x1b8] sm:$0xff]
    %v111 = vld [vmem:[%s1 + $0x1c0] sm:$0xff]
    %v112 = vld [vmem:[%s1 + $0x1c8] sm:$0xff]
    %v113 = vld [vmem:[%s1 + $0x1d0] sm:$0xff]
    %v114 = vld [vmem:[%s1 + $0x1d8] sm:$0xff]
    %v115 = vld [vmem:[%s1 + $0x1e0] sm:$0xff]
    %v116 = vld [vmem:[%s1 + $0x1e8] sm:$0xff]
    %v117 = vld [vmem:[%s1 + $0x1f0] sm:$0xff]
    %v118 = vld [vmem:[%s1 + $0x1f8] sm:$0xff]
    %v119 = vld [vmem:[%s1 + $0x200] sm:$0xff]
    %v120 = vld [vmem:[%s1 + $0x208] sm:$0xff]
    %v121 = vld [vmem:[%s1 + $0x210] sm:$0xff]
    %v122 = vld [vmem:[%s1 + $0x218] sm:$0xff]
    %v123 = vld [vmem:[%s1 + $0x220] sm:$0xff]
    %v124 = vld [vmem:[%s1 + $0x228] sm:$0xff]
    %v125 = vld [vmem:[%s1 + $0x230] sm:$0xff]
    %v126 = vld [vmem:[%s1 + $0x238] sm:$0xff]
    %v127 = vld [vmem:[%s1 + $0x240] sm:$0xff]
    %v128 = vld [vmem:[%s1 + $0x248] sm:$0xff]
    %v129 = vld [vmem:[%s1 + $0x250] sm:$0xff]
    %v130 = vld [vmem:[%s1 + $0x258] sm:$0xff]
    %v131 = vld [vmem:[%s1 + $0x260] sm:$0xff]
    %v132 = vld [vmem:[%s1 + $0x268] sm:$0xff]
    %v133 = vld [vmem:[%s1 + $0x270] sm:$0xff]
    %v134 = vld [vmem:[%s1 + $0x278] sm:$0xff]
    %v135 = vld [vmem:[%s1 + $0x280] sm:$0xff]
    %v136 = vld [vmem:[%s1 + $0x288] sm:$0xff]
    %v137 = vld [vmem:[%s1 + $0x290] sm:$0xff]
    %v138 = vld [vmem:[%s1 + $0x298] sm:$0xff]
    %v139 = vld [vmem:[%s1 + $0x2a0] sm:$0xff]
    %v140 = vld [vmem:[%s1 + $0x2a8] sm:$0xff]
    %v141 = vld [vmem:[%s1 + $0x2b0] sm:$0xff]
    %v142 = vld [vmem:[%s1 + $0x2b8] sm:$0xff]
    %v143 = vld [vmem:[%s1 + $0x2c0] sm:$0xff]
    %v144 = vld [vmem:[%s1 + $0x2c8] sm:$0xff]
    %v145 = vld [vmem:[%s1 + $0x2d0] sm:$0xff]
    %v146 = vld [vmem:[%s1 + $0x2d8] sm:$0xff]
    %v147 = vld [vmem:[%s1 + $0x2e0] sm:$0xff]
    %v148 = vld [vmem:[%s1 + $0x2e8] sm:$0xff]
    %v149 = vld [vmem:[%s1 + $0x2f0] sm:$0xff]
    %v150 = vld [vmem:[%s1 + $0x2f8] sm:$0xff]
    %v151 = vld [vmem:[%s1 + $0x300] sm:$0xff]
    %v152 = vld [vmem:[%s1 + $0x308] sm:$0xff]
    %v153 = vld [vmem:[%s1 + $0x310] sm:$0xff]
    %v154 = vld [vmem:[%s1 + $0x318] sm:$0xff]
    %v155 = vld [vmem:[%s1 + $0x320] sm:$0xff]
    %v156 = vld [vmem:[%s1 + $0x328] sm:$0xff]
    %v157 = vld [vmem:[%s1 + $0x330] sm:$0xff]
    %v158 = vld [vmem:[%s1 + $0x338] sm:$0xff]
    %v159 = vld [vmem:[%s1 + $0x340] sm:$0xff]
    %v160 = vld [vmem:[%s1 + $0x348] sm:$0xff]
    %v161 = vld [vmem:[%s1 + $0x350] sm:$0xff]
    %v162 = vld [vmem:[%s1 + $0x358] sm:$0xff]
    %v163 = vld [vmem:[%s1 + $0x360] sm:$0xff]
    %v164 = vld [vmem:[%s1 + $0x368] sm:$0xff]
    %v165 = vld [vmem:[%s1 + $0x370] sm:$0xff]
    %v166 = vld [vmem:[%s1 + $0x378] sm:$0xff]
    %v167 = vld [vmem:[%s1 + $0x380] sm:$0xff]
    %v168 = vld [vmem:[%s1 + $0x388] sm:$0xff]
    %v169 = vld [vmem:[%s1 + $0x390] sm:$0xff]
    %v170 = vld [vmem:[%s1 + $0x398] sm:$0xff]
    %v171 = vld [vmem:[%s1 + $0x3a0] sm:$0xff]
    %v172 = vld [vmem:[%s1 + $0x3a8] sm:$0xff]
    %v173 = vld [vmem:[%s1 + $0x3b0] sm:$0xff]
    %v174 = vld [vmem:[%s1 + $0x3b8] sm:$0xff]
    %v175 = vld [vmem:[%s1 + $0x3c0] sm:$0xff]
    %v176 = vld [vmem:[%s1 + $0x3c8] sm:$0xff]
    %v177 = vld [vmem:[%s1 + $0x3d0] sm:$0xff]
    %v178 = vld [vmem:[%s1 + $0x3d8] sm:$0xff]
    %v179 = vld [vmem:[%s1 + $0x3e0] sm:$0xff]
    %v180 = vld [vmem:[%s1 + $0x3e8] sm:$0xff]
    %v181 = vld [vmem:[%s1 + $0x3f0] sm:$0xff]
    %v182 = vld [vmem:[%s1 + $0x3f8] sm:$0xff]
    %v183 = vld [vmem:[%s2] sm:$0x3]
    %v185 = vperm.slane %v183, 0
    %v186 = vperm.slane %v183, 1
    %v317 = vunpack.c.l.b16 %v55
    %v318 = vunpack.c.h.b16 %v55
    %v319 = vunpack.c.l.b16 %v56
    %v320 = vunpack.c.h.b16 %v56
    %v321 = vunpack.c.l.b16 %v57
    %v322 = vunpack.c.h.b16 %v57
    %v323 = vunpack.c.l.b16 %v58
    %v324 = vunpack.c.h.b16 %v58
    %v325 = vunpack.c.l.b16 %v59
    %v326 = vunpack.c.h.b16 %v59
    %v327 = vunpack.c.l.b16 %v60
    %v328 = vunpack.c.h.b16 %v60
    %v329 = vunpack.c.l.b16 %v61
    %v330 = vunpack.c.h.b16 %v61
    %v331 = vunpack.c.l.b16 %v62
    %v332 = vunpack.c.h.b16 %v62
    %v333 = vunpack.c.l.b16 %v63
    %v334 = vunpack.c.h.b16 %v63
    %v335 = vunpack.c.l.b16 %v64
    %v336 = vunpack.c.h.b16 %v64
    %v337 = vunpack.c.l.b16 %v65
    %v338 = vunpack.c.h.b16 %v65
    %v339 = vunpack.c.l.b16 %v66
    %v340 = vunpack.c.h.b16 %v66
    %v341 = vunpack.c.l.b16 %v67
    %v342 = vunpack.c.h.b16 %v67
    %v343 = vunpack.c.l.b16 %v68
    %v344 = vunpack.c.h.b16 %v68
    %v345 = vunpack.c.l.b16 %v69
    %v346 = vunpack.c.h.b16 %v69
    %v347 = vunpack.c.l.b16 %v70
    %v348 = vunpack.c.h.b16 %v70
    %v349 = vunpack.c.l.b16 %v71
    %v350 = vunpack.c.h.b16 %v71
    %v351 = vunpack.c.l.b16 %v72
    %v352 = vunpack.c.h.b16 %v72
    %v353 = vunpack.c.l.b16 %v73
    %v354 = vunpack.c.h.b16 %v73
    %v355 = vunpack.c.l.b16 %v74
    %v356 = vunpack.c.h.b16 %v74
    %v357 = vunpack.c.l.b16 %v75
    %v358 = vunpack.c.h.b16 %v75
    %v359 = vunpack.c.l.b16 %v76
    %v360 = vunpack.c.h.b16 %v76
    %v361 = vunpack.c.l.b16 %v77
    %v362 = vunpack.c.h.b16 %v77
    %v363 = vunpack.c.l.b16 %v78
    %v364 = vunpack.c.h.b16 %v78
    %v365 = vunpack.c.l.b16 %v79
    %v366 = vunpack.c.h.b16 %v79
    %v367 = vunpack.c.l.b16 %v80
    %v368 = vunpack.c.h.b16 %v80
    %v369 = vunpack.c.l.b16 %v81
    %v370 = vunpack.c.h.b16 %v81
    %v371 = vunpack.c.l.b16 %v82
    %v372 = vunpack.c.h.b16 %v82
    %v373 = vunpack.c.l.b16 %v83
    %v374 = vunpack.c.h.b16 %v83
    %v375 = vunpack.c.l.b16 %v84
    %v376 = vunpack.c.h.b16 %v84
    %v377 = vunpack.c.l.b16 %v85
    %v378 = vunpack.c.h.b16 %v85
    %v379 = vunpack.c.l.b16 %v86
    %v380 = vunpack.c.h.b16 %v86
    %v381 = vunpack.c.l.b16 %v87
    %v382 = vunpack.c.h.b16 %v87
    %v383 = vunpack.c.l.b16 %v88
    %v384 = vunpack.c.h.b16 %v88
    %v385 = vunpack.c.l.b16 %v89
    %v386 = vunpack.c.h.b16 %v89
    %v387 = vunpack.c.l.b16 %v90
    %v388 = vunpack.c.h.b16 %v90
    %v389 = vunpack.c.l.b16 %v91
    %v390 = vunpack.c.h.b16 %v91
    %v391 = vunpack.c.l.b16 %v92
    %v392 = vunpack.c.h.b16 %v92
    %v393 = vunpack.c.l.b16 %v93
    %v394 = vunpack.c.h.b16 %v93
    %v395 = vunpack.c.l.b16 %v94
    %v396 = vunpack.c.h.b16 %v94
    %v397 = vunpack.c.l.b16 %v95
    %v398 = vunpack.c.h.b16 %v95
    %v399 = vunpack.c.l.b16 %v96
    %v400 = vunpack.c.h.b16 %v96
    %v401 = vunpack.c.l.b16 %v97
    %v402 = vunpack.c.h.b16 %v97
    %v403 = vunpack.c.l.b16 %v98
    %v404 = vunpack.c.h.b16 %v98
    %v405 = vunpack.c.l.b16 %v99
    %v406 = vunpack.c.h.b16 %v99
    %v407 = vunpack.c.l.b16 %v100
    %v408 = vunpack.c.h.b16 %v100
    %v409 = vunpack.c.l.b16 %v101
    %v410 = vunpack.c.h.b16 %v101
    %v411 = vunpack.c.l.b16 %v102
    %v412 = vunpack.c.h.b16 %v102
    %v413 = vunpack.c.l.b16 %v103
    %v414 = vunpack.c.h.b16 %v103
    %v415 = vunpack.c.l.b16 %v104
    %v416 = vunpack.c.h.b16 %v104
    %v417 = vunpack.c.l.b16 %v105
    %v418 = vunpack.c.h.b16 %v105
    %v419 = vunpack.c.l.b16 %v106
    %v420 = vunpack.c.h.b16 %v106
    %v421 = vunpack.c.l.b16 %v107
    %v422 = vunpack.c.h.b16 %v107
    %v423 = vunpack.c.l.b16 %v108
    %v424 = vunpack.c.h.b16 %v108
    %v425 = vunpack.c.l.b16 %v109
    %v426 = vunpack.c.h.b16 %v109
    %v427 = vunpack.c.l.b16 %v110
    %v428 = vunpack.c.h.b16 %v110
    %v429 = vunpack.c.l.b16 %v111
    %v430 = vunpack.c.h.b16 %v111
    %v431 = vunpack.c.l.b16 %v112
    %v432 = vunpack.c.h.b16 %v112
    %v433 = vunpack.c.l.b16 %v113
    %v434 = vunpack.c.h.b16 %v113
    %v435 = vunpack.c.l.b16 %v114
    %v436 = vunpack.c.h.b16 %v114
    %v437 = vunpack.c.l.b16 %v115
    %v438 = vunpack.c.h.b16 %v115
    %v439 = vunpack.c.l.b16 %v116
    %v440 = vunpack.c.h.b16 %v116
    %v441 = vunpack.c.l.b16 %v117
    %v442 = vunpack.c.h.b16 %v117
    %v443 = vunpack.c.l.b16 %v118
    %v444 = vunpack.c.h.b16 %v118
    %v445 = vunpack.c.l.b16 %v119
    %v446 = vunpack.c.h.b16 %v119
    %v447 = vunpack.c.l.b16 %v120
    %v448 = vunpack.c.h.b16 %v120
    %v449 = vunpack.c.l.b16 %v121
    %v450 = vunpack.c.h.b16 %v121
    %v451 = vunpack.c.l.b16 %v122
    %v452 = vunpack.c.h.b16 %v122
    %v453 = vunpack.c.l.b16 %v123
    %v454 = vunpack.c.h.b16 %v123
    %v455 = vunpack.c.l.b16 %v124
    %v456 = vunpack.c.h.b16 %v124
    %v457 = vunpack.c.l.b16 %v125
    %v458 = vunpack.c.h.b16 %v125
    %v459 = vunpack.c.l.b16 %v126
    %v460 = vunpack.c.h.b16 %v126
    %v461 = vunpack.c.l.b16 %v127
    %v462 = vunpack.c.h.b16 %v127
    %v463 = vunpack.c.l.b16 %v128
    %v464 = vunpack.c.h.b16 %v128
    %v465 = vunpack.c.l.b16 %v129
    %v466 = vunpack.c.h.b16 %v129
    %v467 = vunpack.c.l.b16 %v130
    %v468 = vunpack.c.h.b16 %v130
    %v469 = vunpack.c.l.b16 %v131
    %v470 = vunpack.c.h.b16 %v131
    %v471 = vunpack.c.l.b16 %v132
    %v472 = vunpack.c.h.b16 %v132
    %v473 = vunpack.c.l.b16 %v133
    %v474 = vunpack.c.h.b16 %v133
    %v475 = vunpack.c.l.b16 %v134
    %v476 = vunpack.c.h.b16 %v134
    %v477 = vunpack.c.l.b16 %v135
    %v478 = vunpack.c.h.b16 %v135
    %v479 = vunpack.c.l.b16 %v136
    %v480 = vunpack.c.h.b16 %v136
    %v481 = vunpack.c.l.b16 %v137
    %v482 = vunpack.c.h.b16 %v137
    %v483 = vunpack.c.l.b16 %v138
    %v484 = vunpack.c.h.b16 %v138
    %v485 = vunpack.c.l.b16 %v139
    %v486 = vunpack.c.h.b16 %v139
    %v487 = vunpack.c.l.b16 %v140
    %v488 = vunpack.c.h.b16 %v140
    %v489 = vunpack.c.l.b16 %v141
    %v490 = vunpack.c.h.b16 %v141
    %v491 = vunpack.c.l.b16 %v142
    %v492 = vunpack.c.h.b16 %v142
    %v493 = vunpack.c.l.b16 %v143
    %v494 = vunpack.c.h.b16 %v143
    %v495 = vunpack.c.l.b16 %v144
    %v496 = vunpack.c.h.b16 %v144
    %v497 = vunpack.c.l.b16 %v145
    %v498 = vunpack.c.h.b16 %v145
    %v499 = vunpack.c.l.b16 %v146
    %v500 = vunpack.c.h.b16 %v146
    %v501 = vunpack.c.l.b16 %v147
    %v502 = vunpack.c.h.b16 %v147
    %v503 = vunpack.c.l.b16 %v148
    %v504 = vunpack.c.h.b16 %v148
    %v505 = vunpack.c.l.b16 %v149
    %v506 = vunpack.c.h.b16 %v149
    %v507 = vunpack.c.l.b16 %v150
    %v508 = vunpack.c.h.b16 %v150
    %v509 = vunpack.c.l.b16 %v151
    %v510 = vunpack.c.h.b16 %v151
    %v511 = vunpack.c.l.b16 %v152
    %v512 = vunpack.c.h.b16 %v152
    %v513 = vunpack.c.l.b16 %v153
    %v514 = vunpack.c.h.b16 %v153
    %v515 = vunpack.c.l.b16 %v154
    %v516 = vunpack.c.h.b16 %v154
    %v517 = vunpack.c.l.b16 %v155
    %v518 = vunpack.c.h.b16 %v155
    %v519 = vunpack.c.l.b16 %v156
    %v520 = vunpack.c.h.b16 %v156
    %v521 = vunpack.c.l.b16 %v157
    %v522 = vunpack.c.h.b16 %v157
    %v523 = vunpack.c.l.b16 %v158
    %v524 = vunpack.c.h.b16 %v158
    %v525 = vunpack.c.l.b16 %v159
    %v526 = vunpack.c.h.b16 %v159
    %v527 = vunpack.c.l.b16 %v160
    %v528 = vunpack.c.h.b16 %v160
    %v529 = vunpack.c.l.b16 %v161
    %v530 = vunpack.c.h.b16 %v161
    %v531 = vunpack.c.l.b16 %v162
    %v532 = vunpack.c.h.b16 %v162
    %v533 = vunpack.c.l.b16 %v163
    %v534 = vunpack.c.h.b16 %v163
    %v535 = vunpack.c.l.b16 %v164
    %v536 = vunpack.c.h.b16 %v164
    %v537 = vunpack.c.l.b16 %v165
    %v538 = vunpack.c.h.b16 %v165
    %v539 = vunpack.c.l.b16 %v166
    %v540 = vunpack.c.h.b16 %v166
    %v541 = vunpack.c.l.b16 %v167
    %v542 = vunpack.c.h.b16 %v167
    %v543 = vunpack.c.l.b16 %v168
    %v544 = vunpack.c.h.b16 %v168
    %v545 = vunpack.c.l.b16 %v169
    %v546 = vunpack.c.h.b16 %v169
    %v547 = vunpack.c.l.b16 %v170
    %v548 = vunpack.c.h.b16 %v170
    %v549 = vunpack.c.l.b16 %v171
    %v550 = vunpack.c.h.b16 %v171
    %v551 = vunpack.c.l.b16 %v172
    %v552 = vunpack.c.h.b16 %v172
    %v553 = vunpack.c.l.b16 %v173
    %v554 = vunpack.c.h.b16 %v173
    %v555 = vunpack.c.l.b16 %v174
    %v556 = vunpack.c.h.b16 %v174
    %v557 = vunpack.c.l.b16 %v175
    %v558 = vunpack.c.h.b16 %v175
    %v559 = vunpack.c.l.b16 %v176
    %v560 = vunpack.c.h.b16 %v176
    %v561 = vunpack.c.l.b16 %v177
    %v562 = vunpack.c.h.b16 %v177
    %v563 = vunpack.c.l.b16 %v178
    %v564 = vunpack.c.h.b16 %v178
    %v565 = vunpack.c.l.b16 %v179
    %v566 = vunpack.c.h.b16 %v179
    %v567 = vunpack.c.l.b16 %v180
    %v568 = vunpack.c.h.b16 %v180
    %v569 = vunpack.c.l.b16 %v181
    %v570 = vunpack.c.h.b16 %v181
    %v571 = vunpack.c.l.b16 %v182
    %v572 = vunpack.c.h.b16 %v182
    %v573 = vpack.c.b16 %v319, %v317
    %v574 = vpack.c.b16 %v320, %v318
    %v575 = vpack.c.b16 %v323, %v321
    %v576 = vpack.c.b16 %v324, %v322
    %v577 = vpack.c.b16 %v327, %v325
    %v578 = vpack.c.b16 %v328, %v326
    %v579 = vpack.c.b16 %v331, %v329
    %v580 = vpack.c.b16 %v332, %v330
    %v581 = vpack.c.b16 %v335, %v333
    %v582 = vpack.c.b16 %v336, %v334
    %v583 = vpack.c.b16 %v339, %v337
    %v584 = vpack.c.b16 %v340, %v338
    %v585 = vpack.c.b16 %v343, %v341
    %v586 = vpack.c.b16 %v344, %v342
    %v587 = vpack.c.b16 %v347, %v345
    %v588 = vpack.c.b16 %v348, %v346
    %v589 = vpack.c.b16 %v351, %v349
    %v590 = vpack.c.b16 %v352, %v350
    %v591 = vpack.c.b16 %v355, %v353
    %v592 = vpack.c.b16 %v356, %v354
    %v593 = vpack.c.b16 %v359, %v357
    %v594 = vpack.c.b16 %v360, %v358
    %v595 = vpack.c.b16 %v363, %v361
    %v596 = vpack.c.b16 %v364, %v362
    %v597 = vpack.c.b16 %v367, %v365
    %v598 = vpack.c.b16 %v368, %v366
    %v599 = vpack.c.b16 %v371, %v369
    %v600 = vpack.c.b16 %v372, %v370
    %v601 = vpack.c.b16 %v375, %v373
    %v602 = vpack.c.b16 %v376, %v374
    %v603 = vpack.c.b16 %v379, %v377
    %v604 = vpack.c.b16 %v380, %v378
    %v605 = vpack.c.b16 %v383, %v381
    %v606 = vpack.c.b16 %v384, %v382
    %v607 = vpack.c.b16 %v387, %v385
    %v608 = vpack.c.b16 %v388, %v386
    %v609 = vpack.c.b16 %v391, %v389
    %v610 = vpack.c.b16 %v392, %v390
    %v611 = vpack.c.b16 %v395, %v393
    %v612 = vpack.c.b16 %v396, %v394
    %v613 = vpack.c.b16 %v399, %v397
    %v614 = vpack.c.b16 %v400, %v398
    %v615 = vpack.c.b16 %v403, %v401
    %v616 = vpack.c.b16 %v404, %v402
    %v617 = vpack.c.b16 %v407, %v405
    %v618 = vpack.c.b16 %v408, %v406
    %v619 = vpack.c.b16 %v411, %v409
    %v620 = vpack.c.b16 %v412, %v410
    %v621 = vpack.c.b16 %v415, %v413
    %v622 = vpack.c.b16 %v416, %v414
    %v623 = vpack.c.b16 %v419, %v417
    %v624 = vpack.c.b16 %v420, %v418
    %v625 = vpack.c.b16 %v423, %v421
    %v626 = vpack.c.b16 %v424, %v422
    %v627 = vpack.c.b16 %v427, %v425
    %v628 = vpack.c.b16 %v428, %v426
    %v629 = vpack.c.b16 %v431, %v429
    %v630 = vpack.c.b16 %v432, %v430
    %v631 = vpack.c.b16 %v435, %v433
    %v632 = vpack.c.b16 %v436, %v434
    %v633 = vpack.c.b16 %v439, %v437
    %v634 = vpack.c.b16 %v440, %v438
    %v635 = vpack.c.b16 %v443, %v441
    %v636 = vpack.c.b16 %v444, %v442
    %v637 = vpack.c.b16 %v447, %v445
    %v638 = vpack.c.b16 %v448, %v446
    %v639 = vpack.c.b16 %v451, %v449
    %v640 = vpack.c.b16 %v452, %v450
    %v641 = vpack.c.b16 %v455, %v453
    %v642 = vpack.c.b16 %v456, %v454
    %v643 = vpack.c.b16 %v459, %v457
    %v644 = vpack.c.b16 %v460, %v458
    %v645 = vpack.c.b16 %v463, %v461
    %v646 = vpack.c.b16 %v464, %v462
    %v647 = vpack.c.b16 %v467, %v465
    %v648 = vpack.c.b16 %v468, %v466
    %v649 = vpack.c.b16 %v471, %v469
    %v650 = vpack.c.b16 %v472, %v470
    %v651 = vpack.c.b16 %v475, %v473
    %v652 = vpack.c.b16 %v476, %v474
    %v653 = vpack.c.b16 %v479, %v477
    %v654 = vpack.c.b16 %v480, %v478
    %v655 = vpack.c.b16 %v483, %v481
    %v656 = vpack.c.b16 %v484, %v482
    %v657 = vpack.c.b16 %v487, %v485
    %v658 = vpack.c.b16 %v488, %v486
    %v659 = vpack.c.b16 %v491, %v489
    %v660 = vpack.c.b16 %v492, %v490
    %v661 = vpack.c.b16 %v495, %v493
    %v662 = vpack.c.b16 %v496, %v494
    %v663 = vpack.c.b16 %v499, %v497
    %v664 = vpack.c.b16 %v500, %v498
    %v665 = vpack.c.b16 %v503, %v501
    %v666 = vpack.c.b16 %v504, %v502
    %v667 = vpack.c.b16 %v507, %v505
    %v668 = vpack.c.b16 %v508, %v506
    %v669 = vpack.c.b16 %v511, %v509
    %v670 = vpack.c.b16 %v512, %v510
    %v671 = vpack.c.b16 %v515, %v513
    %v672 = vpack.c.b16 %v516, %v514
    %v673 = vpack.c.b16 %v519, %v517
    %v674 = vpack.c.b16 %v520, %v518
    %v675 = vpack.c.b16 %v523, %v521
    %v676 = vpack.c.b16 %v524, %v522
    %v677 = vpack.c.b16 %v527, %v525
    %v678 = vpack.c.b16 %v528, %v526
    %v679 = vpack.c.b16 %v531, %v529
    %v680 = vpack.c.b16 %v532, %v530
    %v681 = vpack.c.b16 %v535, %v533
    %v682 = vpack.c.b16 %v536, %v534
    %v683 = vpack.c.b16 %v539, %v537
    %v684 = vpack.c.b16 %v540, %v538
    %v685 = vpack.c.b16 %v543, %v541
    %v686 = vpack.c.b16 %v544, %v542
    %v687 = vpack.c.b16 %v547, %v545
    %v688 = vpack.c.b16 %v548, %v546
    %v689 = vpack.c.b16 %v551, %v549
    %v690 = vpack.c.b16 %v552, %v550
    %v691 = vpack.c.b16 %v555, %v553
    %v692 = vpack.c.b16 %v556, %v554
    %v693 = vpack.c.b16 %v559, %v557
    %v694 = vpack.c.b16 %v560, %v558
    %v695 = vpack.c.b16 %v563, %v561
    %v696 = vpack.c.b16 %v564, %v562
    %v697 = vpack.c.b16 %v567, %v565
    %v698 = vpack.c.b16 %v568, %v566
    %v699 = vpack.c.b16 %v571, %v569
    %v700 = vpack.c.b16 %v572, %v570
    %829 = vmatpush.bf16.msra.mxu0 %v587
    %830 = vmatpush.bf16.msra.mxu0 %v585
    %831 = vmatpush.bf16.msra.mxu0 %v583
    %832 = vmatpush.bf16.msra.mxu0 %v581
    %833 = vmatpush.bf16.msra.mxu0 %v579
    %834 = vmatpush.bf16.msra.mxu0 %v577
    %835 = vmatpush.bf16.msra.mxu0 %v575
    %836 = vmatpush.bf16.msra.mxu0 %v573
    %837 = vmatmul.bf16.gmra.mxu0 %v47
    %v838 = vpop.f32.mrf.mxu0
    %v839 = vadd.f32 %v185, %v838
    %v840 = vpop.f32.mrf.mxu0
    %841 = vdwg.mxu0
    %842 = vmatpush.bf16.msra.mxu0 %v603
    %843 = vmatpush.bf16.msra.mxu0 %v601
    %844 = vmatpush.bf16.msra.mxu0 %v599
    %845 = vmatpush.bf16.msra.mxu0 %v597
    %846 = vmatpush.bf16.msra.mxu0 %v595
    %847 = vmatpush.bf16.msra.mxu0 %v593
    %848 = vmatpush.bf16.msra.mxu0 %v591
    %849 = vmatpush.bf16.msra.mxu0 %v589
    %850 = vmatmul.bf16.gmra.mxu0 %v48
    %v851 = vpop.f32.mrf.mxu0
    %v852 = vadd.f32 %v839, %v851
    %v853 = vpop.f32.mrf.mxu0
    %854 = vdwg.mxu0
    %855 = vmatpush.bf16.msra.mxu0 %v619
    %856 = vmatpush.bf16.msra.mxu0 %v617
    %857 = vmatpush.bf16.msra.mxu0 %v615
    %858 = vmatpush.bf16.msra.mxu0 %v613
    %859 = vmatpush.bf16.msra.mxu0 %v611
    %860 = vmatpush.bf16.msra.mxu0 %v609
    %861 = vmatpush.bf16.msra.mxu0 %v607
    %862 = vmatpush.bf16.msra.mxu0 %v605
    %863 = vmatmul.bf16.gmra.mxu0 %v49
    %v864 = vpop.f32.mrf.mxu0
    %v865 = vadd.f32 %v852, %v864
    %v866 = vpop.f32.mrf.mxu0
    %867 = vdwg.mxu0
    %868 = vmatpush.bf16.msra.mxu0 %v635
    %869 = vmatpush.bf16.msra.mxu0 %v633
    %870 = vmatpush.bf16.msra.mxu0 %v631
    %871 = vmatpush.bf16.msra.mxu0 %v629
    %872 = vmatpush.bf16.msra.mxu0 %v627
    %873 = vmatpush.bf16.msra.mxu0 %v625
    %874 = vmatpush.bf16.msra.mxu0 %v623
    %875 = vmatpush.bf16.msra.mxu0 %v621
    %876 = vmatmul.bf16.gmra.mxu0 %v50
    %v877 = vpop.f32.mrf.mxu0
    %v878 = vadd.f32 %v865, %v877
    %v879 = vpop.f32.mrf.mxu0
    %880 = vdwg.mxu0
    %881 = vmatpush.bf16.msra.mxu0 %v651
    %882 = vmatpush.bf16.msra.mxu0 %v649
    %883 = vmatpush.bf16.msra.mxu0 %v647
    %884 = vmatpush.bf16.msra.mxu0 %v645
    %885 = vmatpush.bf16.msra.mxu0 %v643
    %886 = vmatpush.bf16.msra.mxu0 %v641
    %887 = vmatpush.bf16.msra.mxu0 %v639
    %888 = vmatpush.bf16.msra.mxu0 %v637
    %889 = vmatmul.bf16.gmra.mxu0 %v51
    %v890 = vpop.f32.mrf.mxu0
    %v891 = vadd.f32 %v878, %v890
    %v892 = vpop.f32.mrf.mxu0
    %893 = vdwg.mxu0
    %894 = vmatpush.bf16.msra.mxu0 %v667
    %895 = vmatpush.bf16.msra.mxu0 %v665
    %896 = vmatpush.bf16.msra.mxu0 %v663
    %897 = vmatpush.bf16.msra.mxu0 %v661
    %898 = vmatpush.bf16.msra.mxu0 %v659
    %899 = vmatpush.bf16.msra.mxu0 %v657
    %900 = vmatpush.bf16.msra.mxu0 %v655
    %901 = vmatpush.bf16.msra.mxu0 %v653
    %902 = vmatmul.bf16.gmra.mxu0 %v52
    %v903 = vpop.f32.mrf.mxu0
    %v904 = vadd.f32 %v891, %v903
    %v905 = vpop.f32.mrf.mxu0
    %906 = vdwg.mxu0
    %907 = vmatpush.bf16.msra.mxu0 %v683
    %908 = vmatpush.bf16.msra.mxu0 %v681
    %909 = vmatpush.bf16.msra.mxu0 %v679
    %910 = vmatpush.bf16.msra.mxu0 %v677
    %911 = vmatpush.bf16.msra.mxu0 %v675
    %912 = vmatpush.bf16.msra.mxu0 %v673
    %913 = vmatpush.bf16.msra.mxu0 %v671
    %914 = vmatpush.bf16.msra.mxu0 %v669
    %915 = vmatmul.bf16.gmra.mxu0 %v53
    %v916 = vpop.f32.mrf.mxu0
    %v917 = vadd.f32 %v904, %v916
    %v918 = vpop.f32.mrf.mxu0
    %919 = vdwg.mxu0
    %920 = vmatpush.bf16.msra.mxu0 %v699
    %921 = vmatpush.bf16.msra.mxu0 %v697
    %922 = vmatpush.bf16.msra.mxu0 %v695
    %923 = vmatpush.bf16.msra.mxu0 %v693
    %924 = vmatpush.bf16.msra.mxu0 %v691
    %925 = vmatpush.bf16.msra.mxu0 %v689
    %926 = vmatpush.bf16.msra.mxu0 %v687
    %927 = vmatpush.bf16.msra.mxu0 %v685
    %928 = vmatmul.bf16.gmra.mxu0 %v54
    %v929 = vpop.f32.mrf.mxu0
    %v930 = vadd.f32 %v917, %v929
    %v931 = vpop.f32.mrf.mxu0
    %932 = vdwg.mxu0
    %933 = vmatpush.bf16.msra.mxu0 %v588
    %934 = vmatpush.bf16.msra.mxu0 %v586
    %935 = vmatpush.bf16.msra.mxu0 %v584
    %936 = vmatpush.bf16.msra.mxu0 %v582
    %937 = vmatpush.bf16.msra.mxu0 %v580
    %938 = vmatpush.bf16.msra.mxu0 %v578
    %939 = vmatpush.bf16.msra.mxu0 %v576
    %940 = vmatpush.bf16.msra.mxu0 %v574
    %941 = vmatmul.bf16.gmra.mxu0 %v47
    %v942 = vpop.f32.mrf.mxu0
    %v943 = vadd.f32 %v186, %v942
    %v944 = vpop.f32.mrf.mxu0
    %945 = vdwg.mxu0
    %946 = vmatpush.bf16.msra.mxu0 %v604
    %947 = vmatpush.bf16.msra.mxu0 %v602
    %948 = vmatpush.bf16.msra.mxu0 %v600
    %949 = vmatpush.bf16.msra.mxu0 %v598
    %950 = vmatpush.bf16.msra.mxu0 %v596
    %951 = vmatpush.bf16.msra.mxu0 %v594
    %952 = vmatpush.bf16.msra.mxu0 %v592
    %953 = vmatpush.bf16.msra.mxu0 %v590
    %954 = vmatmul.bf16.gmra.mxu0 %v48
    %v955 = vpop.f32.mrf.mxu0
    %v956 = vadd.f32 %v943, %v955
    %v957 = vpop.f32.mrf.mxu0
    %958 = vdwg.mxu0
    %959 = vmatpush.bf16.msra.mxu0 %v620
    %960 = vmatpush.bf16.msra.mxu0 %v618
    %961 = vmatpush.bf16.msra.mxu0 %v616
    %962 = vmatpush.bf16.msra.mxu0 %v614
    %963 = vmatpush.bf16.msra.mxu0 %v612
    %964 = vmatpush.bf16.msra.mxu0 %v610
    %965 = vmatpush.bf16.msra.mxu0 %v608
    %966 = vmatpush.bf16.msra.mxu0 %v606
    %967 = vmatmul.bf16.gmra.mxu0 %v49
    %v968 = vpop.f32.mrf.mxu0
    %v969 = vadd.f32 %v956, %v968
    %v970 = vpop.f32.mrf.mxu0
    %971 = vdwg.mxu0
    %972 = vmatpush.bf16.msra.mxu0 %v636
    %973 = vmatpush.bf16.msra.mxu0 %v634
    %974 = vmatpush.bf16.msra.mxu0 %v632
    %975 = vmatpush.bf16.msra.mxu0 %v630
    %976 = vmatpush.bf16.msra.mxu0 %v628
    %977 = vmatpush.bf16.msra.mxu0 %v626
    %978 = vmatpush.bf16.msra.mxu0 %v624
    %979 = vmatpush.bf16.msra.mxu0 %v622
    %980 = vmatmul.bf16.gmra.mxu0 %v50
    %v981 = vpop.f32.mrf.mxu0
    %v982 = vadd.f32 %v969, %v981
    %v983 = vpop.f32.mrf.mxu0
    %984 = vdwg.mxu0
    %985 = vmatpush.bf16.msra.mxu0 %v652
    %986 = vmatpush.bf16.msra.mxu0 %v650
    %987 = vmatpush.bf16.msra.mxu0 %v648
    %988 = vmatpush.bf16.msra.mxu0 %v646
    %989 = vmatpush.bf16.msra.mxu0 %v644
    %990 = vmatpush.bf16.msra.mxu0 %v642
    %991 = vmatpush.bf16.msra.mxu0 %v640
    %992 = vmatpush.bf16.msra.mxu0 %v638
    %993 = vmatmul.bf16.gmra.mxu0 %v51
    %v994 = vpop.f32.mrf.mxu0
    %v995 = vadd.f32 %v982, %v994
    %v996 = vpop.f32.mrf.mxu0
    %997 = vdwg.mxu0
    %998 = vmatpush.bf16.msra.mxu0 %v668
    %999 = vmatpush.bf16.msra.mxu0 %v666
    %1000 = vmatpush.bf16.msra.mxu0 %v664
    %1001 = vmatpush.bf16.msra.mxu0 %v662
    %1002 = vmatpush.bf16.msra.mxu0 %v660
    %1003 = vmatpush.bf16.msra.mxu0 %v658
    %1004 = vmatpush.bf16.msra.mxu0 %v656
    %1005 = vmatpush.bf16.msra.mxu0 %v654
    %1006 = vmatmul.bf16.gmra.mxu0 %v52
    %v1007 = vpop.f32.mrf.mxu0
    %v1008 = vadd.f32 %v995, %v1007
    %v1009 = vpop.f32.mrf.mxu0
    %1010 = vdwg.mxu0
    %1011 = vmatpush.bf16.msra.mxu0 %v684
    %1012 = vmatpush.bf16.msra.mxu0 %v682
    %1013 = vmatpush.bf16.msra.mxu0 %v680
    %1014 = vmatpush.bf16.msra.mxu0 %v678
    %1015 = vmatpush.bf16.msra.mxu0 %v676
    %1016 = vmatpush.bf16.msra.mxu0 %v674
    %1017 = vmatpush.bf16.msra.mxu0 %v672
    %1018 = vmatpush.bf16.msra.mxu0 %v670
    %1019 = vmatmul.bf16.gmra.mxu0 %v53
    %v1020 = vpop.f32.mrf.mxu0
    %v1021 = vadd.f32 %v1008, %v1020
    %v1022 = vpop.f32.mrf.mxu0
    %1023 = vdwg.mxu0
    %1024 = vmatpush.bf16.msra.mxu0 %v700
    %1025 = vmatpush.bf16.msra.mxu0 %v698
    %1026 = vmatpush.bf16.msra.mxu0 %v696
    %1027 = vmatpush.bf16.msra.mxu0 %v694
    %1028 = vmatpush.bf16.msra.mxu0 %v692
    %1029 = vmatpush.bf16.msra.mxu0 %v690
    %1030 = vmatpush.bf16.msra.mxu0 %v688
    %1031 = vmatpush.bf16.msra.mxu0 %v686
    %1032 = vmatmul.bf16.gmra.mxu0 %v54
    %v1033 = vpop.f32.mrf.mxu0
    %v1034 = vadd.f32 %v1021, %v1033
    %v1035 = vpop.f32.mrf.mxu0
    %1036 = vdwg.mxu0
    %v1037 = vmax.f32 %v930, 0.0
    %v1038 = vmax.f32 %v1034, 0.0
    %v1039 = vpack.c.bf16 %v1038, %v1037
    %v1041 = vrot.slane %v1039, 3
    %vm1042 = vcmask 1040384
    %v1045 = vsel %vm1042, %v1039, %v1041
    %1047 = vst [vmem:[#allocation4] sm:$0x3] %v1045
    %v1048 = vld [vmem:[%s3] sm:$0xf]
    %v1049 = vld [vmem:[%s3 + $0x4] sm:$0xf]
    %v1050 = vld [vmem:[%s3 + $0x8] sm:$0xf]
    %v1051 = vld [vmem:[%s3 + $0xc] sm:$0xf]
    %v1052 = vld [vmem:[%s3 + $0x10] sm:$0xf]
    %v1053 = vld [vmem:[%s3 + $0x14] sm:$0xf]
    %v1054 = vld [vmem:[%s3 + $0x18] sm:$0xf]
    %v1055 = vld [vmem:[%s3 + $0x1c] sm:$0xf]
    %v1056 = vld [vmem:[%s3 + $0x20] sm:$0xf]
    %v1057 = vld [vmem:[%s3 + $0x24] sm:$0xf]
    %v1058 = vld [vmem:[%s3 + $0x28] sm:$0xf]
    %v1059 = vld [vmem:[%s3 + $0x2c] sm:$0xf]
    %v1060 = vld [vmem:[%s3 + $0x30] sm:$0xf]
    %v1061 = vld [vmem:[%s3 + $0x34] sm:$0xf]
    %v1062 = vld [vmem:[%s3 + $0x38] sm:$0xf]
    %v1063 = vld [vmem:[%s3 + $0x3c] sm:$0xf]
    %v1064 = vld [vmem:[%s3 + $0x40] sm:$0xf]
    %v1065 = vld [vmem:[%s3 + $0x44] sm:$0xf]
    %v1066 = vld [vmem:[%s3 + $0x48] sm:$0xf]
    %v1067 = vld [vmem:[%s3 + $0x4c] sm:$0xf]
    %v1068 = vld [vmem:[%s3 + $0x50] sm:$0xf]
    %v1069 = vld [vmem:[%s3 + $0x54] sm:$0xf]
    %v1070 = vld [vmem:[%s3 + $0x58] sm:$0xf]
    %v1071 = vld [vmem:[%s3 + $0x5c] sm:$0xf]
    %v1072 = vld [vmem:[%s3 + $0x60] sm:$0xf]
    %v1073 = vld [vmem:[%s3 + $0x64] sm:$0xf]
    %v1074 = vld [vmem:[%s3 + $0x68] sm:$0xf]
    %v1075 = vld [vmem:[%s3 + $0x6c] sm:$0xf]
    %v1076 = vld [vmem:[%s3 + $0x70] sm:$0xf]
    %v1077 = vld [vmem:[%s3 + $0x74] sm:$0xf]
    %v1078 = vld [vmem:[%s3 + $0x78] sm:$0xf]
    %v1079 = vld [vmem:[%s3 + $0x7c] sm:$0xf]
    %v1080 = vld [vmem:[%s4] sm:$0x1]
    %v1082 = vperm.slane %v1080, 0
    %v1084 = vunpack.c.l.b16 %v1039
    %v1085 = vunpack.c.h.b16 %v1039
    %v1086 = vpack.c.b16 %v1084, %v1084
    %v1087 = vpack.c.b16 %v1085, %v1085
    %v1122 = vunpack.c.l.b16 %v1048
    %v1123 = vunpack.c.l.b16 %v1049
    %v1124 = vunpack.c.l.b16 %v1050
    %v1125 = vunpack.c.l.b16 %v1051
    %v1126 = vunpack.c.l.b16 %v1052
    %v1127 = vunpack.c.l.b16 %v1053
    %v1128 = vunpack.c.l.b16 %v1054
    %v1129 = vunpack.c.l.b16 %v1055
    %v1130 = vunpack.c.l.b16 %v1056
    %v1131 = vunpack.c.l.b16 %v1057
    %v1132 = vunpack.c.l.b16 %v1058
    %v1133 = vunpack.c.l.b16 %v1059
    %v1134 = vunpack.c.l.b16 %v1060
    %v1135 = vunpack.c.l.b16 %v1061
    %v1136 = vunpack.c.l.b16 %v1062
    %v1137 = vunpack.c.l.b16 %v1063
    %v1138 = vunpack.c.l.b16 %v1064
    %v1139 = vunpack.c.l.b16 %v1065
    %v1140 = vunpack.c.l.b16 %v1066
    %v1141 = vunpack.c.l.b16 %v1067
    %v1142 = vunpack.c.l.b16 %v1068
    %v1143 = vunpack.c.l.b16 %v1069
    %v1144 = vunpack.c.l.b16 %v1070
    %v1145 = vunpack.c.l.b16 %v1071
    %v1146 = vunpack.c.l.b16 %v1072
    %v1147 = vunpack.c.l.b16 %v1073
    %v1148 = vunpack.c.l.b16 %v1074
    %v1149 = vunpack.c.l.b16 %v1075
    %v1150 = vunpack.c.l.b16 %v1076
    %v1151 = vunpack.c.l.b16 %v1077
    %v1152 = vunpack.c.l.b16 %v1078
    %v1153 = vunpack.c.l.b16 %v1079
    %v1154 = vpack.c.b16 %v1123, %v1122
    %v1155 = vpack.c.b16 %v1125, %v1124
    %v1156 = vpack.c.b16 %v1127, %v1126
    %v1157 = vpack.c.b16 %v1129, %v1128
    %v1158 = vpack.c.b16 %v1131, %v1130
    %v1159 = vpack.c.b16 %v1133, %v1132
    %v1160 = vpack.c.b16 %v1135, %v1134
    %v1161 = vpack.c.b16 %v1137, %v1136
    %v1162 = vpack.c.b16 %v1139, %v1138
    %v1163 = vpack.c.b16 %v1141, %v1140
    %v1164 = vpack.c.b16 %v1143, %v1142
    %v1165 = vpack.c.b16 %v1145, %v1144
    %v1166 = vpack.c.b16 %v1147, %v1146
    %v1167 = vpack.c.b16 %v1149, %v1148
    %v1168 = vpack.c.b16 %v1151, %v1150
    %v1169 = vpack.c.b16 %v1153, %v1152
    %1186 = vmatpush.bf16.msra.mxu0 %v1161
    %1187 = vmatpush.bf16.msra.mxu0 %v1160
    %1188 = vmatpush.bf16.msra.mxu0 %v1159
    %1189 = vmatpush.bf16.msra.mxu0 %v1158
    %1190 = vmatpush.bf16.msra.mxu0 %v1157
    %1191 = vmatpush.bf16.msra.mxu0 %v1156
    %1192 = vmatpush.bf16.msra.mxu0 %v1155
    %1193 = vmatpush.bf16.msra.mxu0 %v1154
    %1194 = vmatmul.bf16.gmra.mxu0 %v1086
    %v1195 = vpop.f32.mrf.mxu0
    %v1196 = vadd.f32 %v1082, %v1195
    %v1197 = vpop.f32.mrf.mxu0
    %1198 = vdwg.mxu0
    %1199 = vmatpush.bf16.msra.mxu0 %v1169
    %1200 = vmatpush.bf16.msra.mxu0 %v1168
    %1201 = vmatpush.bf16.msra.mxu0 %v1167
    %1202 = vmatpush.bf16.msra.mxu0 %v1166
    %1203 = vmatpush.bf16.msra.mxu0 %v1165
    %1204 = vmatpush.bf16.msra.mxu0 %v1164
    %1205 = vmatpush.bf16.msra.mxu0 %v1163
    %1206 = vmatpush.bf16.msra.mxu0 %v1162
    %1207 = vmatmul.bf16.gmra.mxu0 %v1087
    %v1208 = vpop.f32.mrf.mxu0
    %v1209 = vadd.f32 %v1196, %v1208
    %v1210 = vpop.f32.mrf.mxu0
    %1211 = vdwg.mxu0
    %1212 = vst [vmem:[#allocation2] sm:$0x3] %v1209
    // Predicated region
    $region22: #{mlp_mod_forward.1} parent=1 // pred_check
      _
    $region23: #{mlp_mod_forward.1} parent=1 // pred_check_branch
      %1214 = sbr.rel (0) target = $region25
    $region24: #{mlp_mod_forward.1} parent=1 // pred_region
      %1216 = vsyncadd [#allocation3], 0
      %s1218 = sshll.u32 [#allocation2], 4
      %s1219 = int_to_ptr.vmem [resolvable:$true] %s1218
      %s1220 = sshll.u32 %s5, 4
      %s1221 = int_to_ptr.hbm [resolvable:$true] %s1220
      %1223 = dma.vmem_to_hbm [thread:$0]  %s1219, 32, %s1221, [#allocation3]
    $region25: #{mlp_mod_forward.1} parent=1 // pred_fallthru
      _
    // Predicated region
    $region26: #{mlp_mod_forward.1} parent=1 // pred_check
      _
    $region27: #{mlp_mod_forward.1} parent=1 // pred_check_branch
      %1225 = sbr.rel (0) target = $region29
    $region28: #{mlp_mod_forward.1} parent=1 // pred_region
      %1227 = vsyncadd [#allocation5], 0
      %s1229 = sshll.u32 [#allocation4], 4
      %s1230 = int_to_ptr.vmem [resolvable:$true] %s1229
      %s1231 = sshll.u32 %s6, 4
      %s1232 = int_to_ptr.hbm [resolvable:$true] %s1231
      %1234 = dma.vmem_to_hbm [thread:$0]  %s1230, 32, %s1232, [#allocation5]
    $region29: #{mlp_mod_forward.1} parent=1 // pred_fallthru
      _
    // Predicated region
    $region30: #{mlp_mod_forward.1} parent=1 // pred_check
      _
    $region31: #{mlp_mod_forward.1} parent=1 // pred_check_branch
      %1236 = sbr.rel (0) target = $region33
    $region32: #{mlp_mod_forward.1} parent=1 // pred_region
      %1238 = dma.done [#allocation3], 32
    $region33: #{mlp_mod_forward.1} parent=1 // pred_fallthru
      _
    // Predicated region
    $region34: #{mlp_mod_forward.1} parent=1 // pred_check
      _
    $region35: #{mlp_mod_forward.1} parent=1 // pred_check_branch
      %1240 = sbr.rel (0) target = $region37
    $region36: #{mlp_mod_forward.1} parent=1 // pred_region
      %1242 = dma.done [#allocation5], 32
    $region37: #{mlp_mod_forward.1} parent=1 // pred_fallthru
      _
    %1243 = vsyncpa [#allocation3], 1
    %1244 = vsyncpa [#allocation5], 1

</llo_original>
